<compile_context>
chip_gen: v6e
topology: v6e:2x2x1
jax: 0.10.0
libtpu: 0.0.40
codegen_flags: <defaults>
</compile_context>

<pallas_src>
import functools
import math

import jax
import jax.numpy as jnp
from jax import lax
from jax.experimental import pallas as pl
from jax.experimental.pallas import tpu as pltpu


_ONEHOT_MAX_VOCAB = 1024               # use MXU one-hot gather below this
_RESIDENT_TABLE_MAX_BYTES = 40 << 20   # headroom for v7x's 64 MiB VMEM


def _round_up(x: int, m: int) -> int:
    return ((x + m - 1) // m) * m


def _embed_onehot_kernel(tok_ref, emb_ref, out_ref, *, scale):
    # tok_ref: (T, 1) int32 VMEM token chunk
    # emb_ref: (V, E) VMEM-resident embedding table
    # out_ref: (T, E) dense output tile
    T = tok_ref.shape[0]
    V = emb_ref.shape[0]
    col = lax.broadcasted_iota(jnp.int32, (T, V), 1)
    onehot = (tok_ref[...] == col).astype(jnp.float32)            # (T, V)
    acc = jnp.dot(onehot, emb_ref[...].astype(jnp.float32),
                  preferred_element_type=jnp.float32)             # (T, E) on MXU
    out_ref[...] = (acc * scale).astype(out_ref.dtype)


def _embed_rowread_kernel(tok_ref, emb_ref, out_ref, *, scale, chunk):
    # tok_ref: SMEM (N_pad,) int32 (scalar prefetch)
    # emb_ref: (V, E) VMEM-resident embedding table
    # out_ref: (T, E) dense output tile for this chunk
    base = pl.program_id(0) * chunk

    def body(r, carry):
        row = emb_ref[tok_ref[base + r], :]          # dynamic-row vld from VMEM
        out_ref[r, :] = (row * scale).astype(out_ref.dtype)
        return carry

    lax.fori_loop(0, chunk, body, 0)


def token_embedding(tokens: jax.Array, emb_table: jax.Array) -> jax.Array:
    """tokens: (B, S) int, emb_table: (V, E) float -> (B, S, E) float."""
    B, S = tokens.shape
    V, E = emb_table.shape
    N = B * S
    scale = math.sqrt(E)
    out_dtype = emb_table.dtype

    table_bytes = V * E * jnp.dtype(emb_table.dtype).itemsize
    if table_bytes > _RESIDENT_TABLE_MAX_BYTES:
        # TODO(synk): add an HBM-resident path (batched, double-buffered
        # pltpu.make_async_copy row gather) for tables that do not fit in VMEM.
        raise NotImplementedError("embedding table too large for VMEM-resident path")

    # Chunk the token axis; T is sublane-aligned (multiple of 8).
    T = min(512, _round_up(N, 8))
    N_pad = _round_up(N, T)
    n_chunks = N_pad // T
    flat = jnp.zeros((N_pad,), jnp.int32).at[:N].set(
        tokens.reshape(N).astype(jnp.int32))

    # Scoped VMEM: resident table + double-buffered (T, E) output tiles
    # + token blocks + slack, bounded well under v7x's 64 MiB physical VMEM.
    vmem_needed = (table_bytes
                   + 2 * T * E * jnp.dtype(out_dtype).itemsize
                   + 2 * T * 4
                   + (4 << 20))
    vmem_limit = int(min(max(vmem_needed, 32 << 20), 60 << 20))

    cparams = pltpu.CompilerParams(
        dimension_semantics=("parallel",),   # chunks independent -> v7x 2 TCs
        vmem_limit_bytes=vmem_limit,
    )

    if V <= _ONEHOT_MAX_VOCAB:
        kernel = functools.partial(_embed_onehot_kernel, scale=scale)
        out = pl.pallas_call(
            kernel,
            out_shape=jax.ShapeDtypeStruct((N_pad, E), out_dtype),
            grid_spec=pl.GridSpec(
                grid=(n_chunks,),
                in_specs=[
                    pl.BlockSpec((T, 1), lambda i: (i, 0)),    # token chunk
                    pl.BlockSpec((V, E), lambda i: (0, 0)),    # resident table
                ],
                out_specs=pl.BlockSpec((T, E), lambda i: (i, 0)),
            ),
            compiler_params=cparams,
        )(flat.reshape(N_pad, 1), emb_table)
    else:
        kernel = functools.partial(_embed_rowread_kernel, scale=scale, chunk=T)
        out = pl.pallas_call(
            kernel,
            out_shape=jax.ShapeDtypeStruct((N_pad, E), out_dtype),
            grid_spec=pltpu.PrefetchScalarGridSpec(
                num_scalar_prefetch=1,       # token ids live in SMEM
                grid=(n_chunks,),
                in_specs=[
                    pl.BlockSpec((V, E), lambda i, tok: (0, 0)),  # resident table
                ],
                out_specs=pl.BlockSpec((T, E), lambda i, tok: (i, 0)),
            ),
            compiler_params=cparams,
        )(flat, emb_table)

    return out[:N].reshape(B, S, E)


if __name__ == "__main__":
    key = jax.random.PRNGKey(0)
    k_emb, k_tok, k_emb2, k_tok2 = jax.random.split(key, 4)

    # Config 1: small vocab (matches TokenEmbedding(32, 128)) -> one-hot MXU path.
    vocab_size, emb_size, B, S = 32, 128, 2, 8
    emb_table = jax.random.normal(k_emb, (vocab_size, emb_size), dtype=jnp.float32)
    tokens = jax.random.randint(k_tok, (B, S), minval=0, maxval=vocab_size,
                                dtype=jnp.int32)
    out = jax.block_until_ready(token_embedding(tokens, emb_table))
    ref = jnp.take(emb_table, tokens, axis=0) * math.sqrt(emb_size)
    assert out.shape == (B, S, emb_size)
    # Loose tolerance: the MXU may evaluate the f32 one-hot matmul at reduced
    # pass precision; still far tighter than the gap between distinct rows.
    assert jnp.allclose(out, ref, rtol=1e-2, atol=1e-2), "one-hot path mismatch"

    # Config 2: larger vocab -> VMEM-resident row-read path (exact copies).
    vocab2, emb2 = 2048, 256
    emb_table2 = jax.random.normal(k_emb2, (vocab2, emb2), dtype=jnp.float32)
    tokens2 = jax.random.randint(k_tok2, (B, S), minval=0, maxval=vocab2,
                                 dtype=jnp.int32)
    out2 = jax.block_until_ready(token_embedding(tokens2, emb_table2))
    ref2 = jnp.take(emb_table2, tokens2, axis=0) * math.sqrt(emb2)
    assert out2.shape == (B, S, emb2)
    assert jnp.allclose(out2, ref2, rtol=1e-6, atol=1e-6), "row-read path mismatch"

    print("KERNEL_OK")
</pallas_src>

<mosaic_0001>
module attributes {stable_mosaic.version = 11 : i64} {
  func.func @_embed_onehot_kernel(%arg0: i32, %arg1: memref<16x1xi32, #tpu.memory_space<vmem>>, %arg2: memref<32x128xf32, #tpu.memory_space<vmem>>, %arg3: memref<16x128xf32, #tpu.memory_space<vmem>>) attributes {dimension_semantics = [#tpu.dimension_semantics<parallel>], iteration_bounds = array<i64: 1>, scalar_prefetch = 0 : i64, scratch_operands = 0 : i64, tpu.core_type = #tpu.core_type<tc>, window_params = [{transform_indices = @transform_0, window_bounds = array<i64: 16, 1>}, {pipeline_mode = #tpu.pipeline_mode<synchronous>, transform_indices = @transform_1, window_bounds = array<i64: 32, 128>}, {transform_indices = @transform_2, window_bounds = array<i64: 16, 128>}]} {
    %0 = tpu.iota {dimensions = array<i32: 1>} : vector<16x32xi32>
    %c0 = arith.constant 0 : index
    %c0_0 = arith.constant 0 : index
    %1 = vector.load %arg1[%c0, %c0_0] : memref<16x1xi32, #tpu.memory_space<vmem>>, vector<16x1xi32>
    %2 = vector.broadcast %1 : vector<16x1xi32> to vector<16x32xi32>
    %3 = arith.cmpi eq, %2, %0 : vector<16x32xi32>
    %4 = arith.extui %3 : vector<16x32xi1> to vector<16x32xi32>
    %5 = arith.sitofp %4 : vector<16x32xi32> to vector<16x32xf32>
    %c0_1 = arith.constant 0 : index
    %c0_2 = arith.constant 0 : index
    %6 = vector.load %arg2[%c0_1, %c0_2] : memref<32x128xf32, #tpu.memory_space<vmem>>, vector<32x128xf32>
    %cst = arith.constant dense<0.000000e+00> : vector<16x128xf32>
    %7 = tpu.matmul %5, %6, %cst {dimension_numbers = #tpu.dot_dimension_numbers<[1], [0], [0], [1], [0, 0, 1, 1], [], []>} : vector<16x32xf32>, vector<32x128xf32>, vector<16x128xf32> -> vector<16x128xf32>
    %cst_3 = arith.constant 11.3137083 : f32
    %8 = vector.broadcast %cst_3 : f32 to vector<16x128xf32>
    %9 = arith.mulf %7, %8 : vector<16x128xf32>
    %c0_4 = arith.constant 0 : index
    %c0_5 = arith.constant 0 : index
    %10 = vector.load %arg3[%c0_4, %c0_5] : memref<16x128xf32, #tpu.memory_space<vmem>>, vector<16x128xf32>
    tpu.vector_store %arg3[%c0_4, %c0_5], %9 {strides = array<i32>} : memref<16x128xf32, #tpu.memory_space<vmem>>, vector<16x128xf32>,
    return
  }
  func.func @transform_0(%arg0: i32) -> (i32, i32) {
    %c0_i32 = arith.constant 0 : i32
    %c0_i32_0 = arith.constant 0 : i32
    return %arg0, %c0_i32 : i32, i32
  }
  func.func @transform_1(%arg0: i32) -> (i32, i32) {
    %c0_i32 = arith.constant 0 : i32
    %c0_i32_0 = arith.constant 0 : i32
    %c0_i32_1 = arith.constant 0 : i32
    return %c0_i32, %c0_i32_0 : i32, i32
  }
  func.func @transform_2(%arg0: i32) -> (i32, i32) {
    %c0_i32 = arith.constant 0 : i32
    %c0_i32_0 = arith.constant 0 : i32
    return %arg0, %c0_i32 : i32, i32
  }
}

</mosaic_0001>

<llo_original>
// kernel: tpu_custom_call.1
$region0: #{tpu_custom_call.1}
  #allocation0 [shape = 'u32[]', space=smem, size = 0x4, offset = 0x4, fixed_abs, tag = 'smem constant byte address 0x4 - core index']
  #allocation1 [shape = 'u32[144,128]{1,0:T(1,128)}', space=vmem, size = 0x12000, scoped, tag = 'internal scratch']
  %s0 = inlined_call_operand.vmem [shape: s32[16,1], index: 0, kind: input, shape index: {}]
  %s1 = inlined_call_operand.hbm [shape: f32[32,128], index: 1, kind: input, shape index: {}]
  %s2 = inlined_call_operand.hbm [shape: f32[16,128], index: 2, kind: output, shape index: {}]
  %s3 = sld [smem:[#allocation0]]
  $region22: #{tpu_custom_call.1} parent=0
    _
  %s5 = ssub.s32 1, %s3
  %s6 = scalar_select 0, %s5, %s3
  $region1: #{tpu_custom_call.1} parent=0
    #allocation2 [shape = 'u8[16384]{0}', space=vmem, size = 0x4000, scoped, tag = 'input window, operand 1, single buffered']
    #allocation3 [shape = 's32[1]{0}', space=sflag, size = 0x4, scoped, tag = 'scoped memory for tpu_custom_call.1']
    #allocation4 [shape = 's32[1]{0}', space=sflag, size = 0x4, scoped, tag = 'scoped memory for tpu_custom_call.1']
    #allocation5 [shape = 'u8[8192]{0}', space=vmem, size = 0x2000, scoped, tag = 'output window, operand 0, single buffered']
    %7 = vsyncpa [#allocation3], 0
    %8 = vsyncpa [#allocation4], 0
    // Predicated region
    $region2: #{tpu_custom_call.1} parent=1 // pred_check
      _
    $region3: #{tpu_custom_call.1} parent=1 // pred_check_branch
      %10 = sbr.rel (0) target = $region5
    $region4: #{tpu_custom_call.1} parent=1 // pred_region
      _
    $region5: #{tpu_custom_call.1} parent=1 // pred_fallthru
      _
    // Predicated region
    $region6: #{tpu_custom_call.1} parent=1 // pred_check
      _
    $region7: #{tpu_custom_call.1} parent=1 // pred_check_branch
      %12 = sbr.rel (0) target = $region9
    $region8: #{tpu_custom_call.1} parent=1 // pred_region
      %s14 = ssub.s32 512, 512
      %15 = vsyncadd [#allocation3], %s14
      %s16 = sshll.u32 [#allocation2], 4
      %s17 = int_to_ptr.vmem [resolvable:$true] %s16
      %22 = dma.hbm_to_vmem [thread:$0]  %s1, 512, %s17, [#allocation3], 128, 128, 8
    $region9: #{tpu_custom_call.1} parent=1 // pred_fallthru
      _
    // Predicated region
    $region10: #{tpu_custom_call.1} parent=1 // pred_check
      _
    $region11: #{tpu_custom_call.1} parent=1 // pred_check_branch
      %24 = sbr.rel (0) target = $region13
    $region12: #{tpu_custom_call.1} parent=1 // pred_region
      %25 = dma.done [#allocation3], 512
    $region13: #{tpu_custom_call.1} parent=1 // pred_fallthru
      _
    %v26 = vlaneseq
    %v27 = vand.u32 %v26, 127
    %v28 = vld [vmem:[%s0] sm:$0xff]
    %v29 = vld [vmem:[%s0 + $0x8] sm:$0xff]
    %30 = vset.pattern.permute.xlu0 0
    %31 = vperm.xlu0 %30, %v28
    %v32 = vpop.permute.xlu0 %31
    %33 = vset.pattern.permute.xlu0 0
    %34 = vperm.xlu0 %33, %v29
    %v35 = vpop.permute.xlu0 %34
    %vm36 = vcmp.eq.s32.totalorder %v32, %v27
    %vm37 = vcmp.eq.s32.totalorder %v35, %v27
    %v38 = vsel %vm36, 1, 0
    %v39 = vsel %vm37, 1, 0
    %v40 = vcvt.s32.f32 %v38
    %v41 = vcvt.s32.f32 %v39
    %v42 = vld [vmem:[#allocation2] sm:$0xff]
    %v43 = vld [vmem:[#allocation2 + $0x8] sm:$0xff]
    %v44 = vld [vmem:[#allocation2 + $0x10] sm:$0xff]
    %v45 = vld [vmem:[#allocation2 + $0x18] sm:$0xff]
    %vm46 = vcmask 261120
    %v48 = vsel %vm46, %v40, 0
    %v51 = vsel %vm46, %v41, 0
    %53 = vmatprep.subr.mxu0 0.0
    %54 = vmatpush1.msra.mxu0 0.0
    %55 = vmatprep.subr.mxu0 0.0
    %56 = vmatpush1.msra.mxu0 0.0
    %57 = vmatprep.subr.mxu0 0.0
    %58 = vmatpush1.msra.mxu0 0.0
    %59 = vmatprep.subr.mxu0 0.0
    %60 = vmatpush1.msra.mxu0 0.0
    %61 = vmatprep.subr.mxu0 0.0
    %62 = vmatpush1.msra.mxu0 0.0
    %63 = vmatprep.subr.mxu0 0.0
    %64 = vmatpush1.msra.mxu0 0.0
    %65 = vmatprep.subr.mxu0 0.0
    %66 = vmatpush1.msra.mxu0 0.0
    %67 = vmatprep.subr.mxu0 0.0
    %68 = vmatpush1.msra.mxu0 0.0
    %69 = vmatprep.subr.mxu0 0.0
    %70 = vmatpush1.msra.mxu0 0.0
    %71 = vmatprep.subr.mxu0 0.0
    %72 = vmatpush1.msra.mxu0 0.0
    %73 = vmatprep.subr.mxu0 0.0
    %74 = vmatpush1.msra.mxu0 0.0
    %75 = vmatprep.subr.mxu0 0.0
    %76 = vmatpush1.msra.mxu0 0.0
    %77 = vmatprep.subr.mxu0 0.0
    %78 = vmatpush1.msra.mxu0 %v45
    %79 = vmatprep.subr.mxu0 0.0
    %80 = vmatpush1.msra.mxu0 %v44
    %81 = vmatprep.subr.mxu0 0.0
    %82 = vmatpush1.msra.mxu0 %v43
    %83 = vmatprep.subr.mxu0 0.0
    %84 = vmatpush1.msra.mxu0 %v42
    %85 = vmatprep.subr.mxu0 0.0
    %86 = vmatpush2.msra.mxu0 0.0
    %87 = vmatprep.subr.mxu0 0.0
    %88 = vmatpush2.msra.mxu0 0.0
    %89 = vmatprep.subr.mxu0 0.0
    %90 = vmatpush2.msra.mxu0 0.0
    %91 = vmatprep.subr.mxu0 0.0
    %92 = vmatpush2.msra.mxu0 0.0
    %93 = vmatprep.subr.mxu0 0.0
    %94 = vmatpush2.msra.mxu0 0.0
    %95 = vmatprep.subr.mxu0 0.0
    %96 = vmatpush2.msra.mxu0 0.0
    %97 = vmatprep.subr.mxu0 0.0
    %98 = vmatpush2.msra.mxu0 0.0
    %99 = vmatprep.subr.mxu0 0.0
    %100 = vmatpush2.msra.mxu0 0.0
    %101 = vmatprep.subr.mxu0 0.0
    %102 = vmatpush2.msra.mxu0 0.0
    %103 = vmatprep.subr.mxu0 0.0
    %104 = vmatpush2.msra.mxu0 0.0
    %105 = vmatprep.subr.mxu0 0.0
    %106 = vmatpush2.msra.mxu0 0.0
    %107 = vmatprep.subr.mxu0 0.0
    %108 = vmatpush2.msra.mxu0 0.0
    %109 = vmatprep.subr.mxu0 0.0
    %110 = vmatpush2.msra.mxu0 0.0
    %111 = vmatprep.subr.mxu0 0.0
    %112 = vmatpush2.msra.mxu0 0.0
    %113 = vmatprep.subr.mxu0 0.0
    %114 = vmatpush2.msra.mxu0 0.0
    %115 = vmatprep.subr.mxu0 0.0
    %116 = vmatpush2.msra.mxu0 0.0
    %117 = vmatprep.mubr.f32.mxu0 0.0
    %118 = vmatmul.mubr.f32.gmra.mxu0 %v48
    %v119 = vpop.f32.mrf.mxu0
    %v120 = vadd.f32 0.0, %v119
    %v121 = vpop.f32.mrf.mxu0
    %122 = vmatprep.mubr.f32.mxu0 0.0
    %123 = vmatmul.mubr.f32.gmra.mxu0 %v51
    %v124 = vpop.f32.mrf.mxu0
    %v125 = vadd.f32 0.0, %v124
    %v126 = vpop.f32.mrf.mxu0
    %127 = vdwg.mxu0
    %v128 = vmul.f32 %v120, 11.313708
    %v129 = vmul.f32 %v125, 11.313708
    %130 = vst [vmem:[#allocation5] sm:$0xff] %v128
    %131 = vst [vmem:[#allocation5 + $0x8] sm:$0xff] %v129
    // Predicated region
    $region14: #{tpu_custom_call.1} parent=1 // pred_check
      _
    $region15: #{tpu_custom_call.1} parent=1 // pred_check_branch
      %133 = sbr.rel (0) target = $region17
    $region16: #{tpu_custom_call.1} parent=1 // pred_region
      %s135 = ssub.s32 256, 256
      %136 = vsyncadd [#allocation4], %s135
      %s137 = sshll.u32 [#allocation5], 4
      %s138 = int_to_ptr.vmem [resolvable:$true] %s137
      %143 = dma.vmem_to_hbm [thread:$0]  %s138, 256, %s2, [#allocation4], 128, 128, 8
    $region17: #{tpu_custom_call.1} parent=1 // pred_fallthru
      _
    // Predicated region
    $region18: #{tpu_custom_call.1} parent=1 // pred_check
      _
    $region19: #{tpu_custom_call.1} parent=1 // pred_check_branch
      %145 = sbr.rel (0) target = $region21
    $region20: #{tpu_custom_call.1} parent=1 // pred_region
      %146 = dma.done [#allocation4], 256
    $region21: #{tpu_custom_call.1} parent=1 // pred_fallthru
      _
    %147 = vsyncpa [#allocation3], 1
    %148 = vsyncpa [#allocation4], 1

</llo_original>
